<compile_context>
chip_gen: v6e
topology: v6e:2x2x1
jax: 0.10.0
libtpu: 0.0.40
codegen_flags: <defaults>
</compile_context>

<pallas_src>
import math
from functools import lru_cache

import jax
import jax.numpy as jnp
from jax.experimental import pallas as pl
from jax.experimental.pallas import tpu as pltpu


def _add_pe_kernel(x_ref, pe_ref, o_ref):
    """One (batch_tile, lane_tile) block: out = x + pe, f32 accumulate, cast once."""
    o_ref[...] = (x_ref[...].astype(jnp.float32) + pe_ref[...]).astype(o_ref.dtype)


def _build_pe_buffer(seq_len, embedding_size):
    """Sinusoidal buffer, bit-identical formula to the PyTorch registered buffer."""
    position = jnp.arange(seq_len, dtype=jnp.float32)[:, None]
    div_term = jnp.exp(jnp.arange(0, embedding_size, 2, dtype=jnp.float32)
                       * (-math.log(10000.0) / embedding_size))
    pe = jnp.zeros((seq_len, embedding_size), jnp.float32)
    pe = pe.at[:, 0::2].set(jnp.sin(position * div_term))
    pe = pe.at[:, 1::2].set(jnp.cos(position * div_term))
    return pe  # (S, E) float32


@lru_cache(maxsize=None)
def _pe_flat_cached(seq_len, embedding_size):
    """register_buffer analogue: built once per (S, E), kept on device, flattened."""
    pe = _build_pe_buffer(seq_len, embedding_size)
    return jax.device_put(pe.reshape(1, seq_len * embedding_size))


def _device_kind():
    try:
        return jax.devices()[0].device_kind.lower()
    except Exception:  # pragma: no cover - e.g. interpret mode / no device
        return ""


def _vmem_limit_bytes(kind):
    # v7x: 64 MiB physical VMEM -> keep the scoped limit at 48 MiB.
    # v5e/v6e: 128 MiB physical -> 64 MiB scoped is comfortably safe.
    if "v7" in kind:
        return 48 * 1024 * 1024
    return 64 * 1024 * 1024


def _choose_tiles(B, L, x_bytes, out_bytes, pe_bytes, budget):
    """Pick (batch_tile, lane_tile) for the flattened (B, L) layout.

    Live VMEM ~= double-buffered x + out tiles plus the (double-buffered but
    tiny) pe tile.  Batch tile is a multiple of 8 or the full B; lane tile is a
    multiple of 128 or the full L (so stores stay unmasked / lane-dense)."""
    def live(bt, lt):
        return 2 * bt * lt * (x_bytes + out_bytes) + 2 * lt * pe_bytes

    # 1) Whole array in a single block.
    if live(B, L) <= budget:
        return B, L
    # 2) Full lane dim, shrink the batch tile (multiples of 8).
    if B > 8:
        bt = (budget - 2 * L * pe_bytes) // (2 * L * (x_bytes + out_bytes))
        bt = min(B, max(8, (bt // 8) * 8))
        if live(bt, L) <= budget:
            return bt, L
    # 3) Minimal batch tile, tile the lane dim in multiples of 128.
    bt = B if B <= 8 else 8
    lt = budget // (2 * bt * (x_bytes + out_bytes) + 2 * pe_bytes)
    lt = min(L, max(128, (lt // 128) * 128))
    return bt, lt


def positional_encoding(x, *, max_len=5000, batch_tile=None, lane_tile=None):
    """x: (B, S, E) float array. Returns x + pe[None, :S] (f32-promoted like PyTorch)."""
    B, S, E = x.shape
    assert S <= max_len, "sequence length exceeds max_len"
    assert E % 2 == 0, "embedding_size must be even (same limitation as the PyTorch recipe)"

    L = S * E
    out_dtype = jnp.promote_types(x.dtype, jnp.float32)  # x + f32 buffer promotes in torch
    pe = _pe_flat_cached(S, E)                            # (1, L) float32, cached

    kind = _device_kind()
    vmem_limit = _vmem_limit_bytes(kind)
    budget = (3 * vmem_limit) // 4                        # leave headroom for internal scratch

    bt, lt = _choose_tiles(B, L, x.dtype.itemsize, jnp.dtype(out_dtype).itemsize, 4, budget)
    if batch_tile is not None:
        bt = batch_tile
    if lane_tile is not None:
        lt = lane_tile

    # v7x: make sure at least one parallel axis has >=2 steps so both TCs get work.
    if ("v7" in kind and batch_tile is None and lane_tile is None
            and (B + bt - 1) // bt == 1 and (L + lt - 1) // lt == 1 and L >= 256):
        half = (L + 1) // 2
        lt = min(L, ((half + 127) // 128) * 128)

    n_lane = (L + lt - 1) // lt
    n_batch = (B + bt - 1) // bt
    grid = (n_lane, n_batch)  # batch innermost -> pe block index constant, stays resident

    x2 = x.reshape(B, L)      # free: contiguous trailing-dim collapse

    out = pl.pallas_call(
        _add_pe_kernel,
        out_shape=jax.ShapeDtypeStruct((B, L), out_dtype),
        grid_spec=pltpu.PrefetchScalarGridSpec(
            num_scalar_prefetch=0,
            grid=grid,
            in_specs=[
                pl.BlockSpec((bt, lt), lambda l, b: (b, l)),   # x
                pl.BlockSpec((1, lt), lambda l, b: (0, l)),    # pe (ignores b -> reused)
            ],
            out_specs=pl.BlockSpec((bt, lt), lambda l, b: (b, l)),
        ),
        compiler_params=pltpu.CompilerParams(
            dimension_semantics=("parallel", "parallel"),
            vmem_limit_bytes=vmem_limit,
        ),
    )(x2, pe)

    return out.reshape(B, S, E)


if __name__ == "__main__":
    key = jax.random.PRNGKey(0)
    k0, k1, k2 = jax.random.split(key, 3)

    # 1) Small shape consistent with the module's usage (single whole-array block).
    B, S, E = 2, 8, 32
    x = jax.random.normal(k0, (B, S, E), dtype=jnp.float32)
    out = jax.block_until_ready(positional_encoding(x))
    ref = x + _build_pe_buffer(S, E)[None]
    assert out.shape == (B, S, E) and out.dtype == jnp.float32
    assert jnp.allclose(out, ref, atol=1e-5, rtol=1e-5)

    # 2) Exercise the tiled path: multiple lane and batch tiles, pe resident over batch.
    B2, S2, E2 = 16, 64, 128
    x2 = jax.random.normal(k1, (B2, S2, E2), dtype=jnp.float32)
    out2 = jax.block_until_ready(positional_encoding(x2, batch_tile=8, lane_tile=2048))
    ref2 = x2 + _build_pe_buffer(S2, E2)[None]
    assert jnp.allclose(out2, ref2, atol=1e-5, rtol=1e-5)

    # 3) Low-precision input: output promotes to float32 (matches torch's x + f32 buffer).
    x3 = jax.random.normal(k2, (B, S, E), dtype=jnp.bfloat16)
    out3 = jax.block_until_ready(positional_encoding(x3))
    ref3 = x3.astype(jnp.float32) + _build_pe_buffer(S, E)[None]
    assert out3.dtype == jnp.float32
    assert jnp.allclose(out3, ref3, atol=1e-5, rtol=1e-5)

    print("KERNEL_OK")
</pallas_src>

<mosaic_0001>
module attributes {stable_mosaic.version = 11 : i64} {
  func.func @_add_pe_kernel(%arg0: i32, %arg1: i32, %arg2: memref<2x256xf32, #tpu.memory_space<vmem>>, %arg3: memref<1x256xf32, #tpu.memory_space<vmem>>, %arg4: memref<2x256xf32, #tpu.memory_space<vmem>>) attributes {dimension_semantics = [#tpu.dimension_semantics<parallel>, #tpu.dimension_semantics<parallel>], iteration_bounds = array<i64: 1, 1>, scalar_prefetch = 0 : i64, scratch_operands = 0 : i64, tpu.core_type = #tpu.core_type<tc>, window_params = [{transform_indices = @transform_0, window_bounds = array<i64: 2, 256>}, {transform_indices = @transform_1, window_bounds = array<i64: 1, 256>}, {transform_indices = @transform_2, window_bounds = array<i64: 2, 256>}]} {
    %c0 = arith.constant 0 : index
    %c0_0 = arith.constant 0 : index
    %0 = vector.load %arg2[%c0, %c0_0] : memref<2x256xf32, #tpu.memory_space<vmem>>, vector<2x256xf32>
    %c0_1 = arith.constant 0 : index
    %c0_2 = arith.constant 0 : index
    %1 = vector.load %arg3[%c0_1, %c0_2] : memref<1x256xf32, #tpu.memory_space<vmem>>, vector<1x256xf32>
    %2 = vector.broadcast %1 : vector<1x256xf32> to vector<2x256xf32>
    %3 = arith.addf %0, %2 : vector<2x256xf32>
    %c0_3 = arith.constant 0 : index
    %c0_4 = arith.constant 0 : index
    %4 = vector.load %arg4[%c0_3, %c0_4] : memref<2x256xf32, #tpu.memory_space<vmem>>, vector<2x256xf32>
    tpu.vector_store %arg4[%c0_3, %c0_4], %3 {strides = array<i32>} : memref<2x256xf32, #tpu.memory_space<vmem>>, vector<2x256xf32>,
    return
  }
  func.func @transform_0(%arg0: i32, %arg1: i32) -> (i32, i32) {
    %c0_i32 = arith.constant 0 : i32
    return %arg1, %arg0 : i32, i32
  }
  func.func @transform_1(%arg0: i32, %arg1: i32) -> (i32, i32) {
    %c0_i32 = arith.constant 0 : i32
    %c0_i32_0 = arith.constant 0 : i32
    return %c0_i32, %arg0 : i32, i32
  }
  func.func @transform_2(%arg0: i32, %arg1: i32) -> (i32, i32) {
    %c0_i32 = arith.constant 0 : i32
    return %arg1, %arg0 : i32, i32
  }
}

</mosaic_0001>

<llo_original>
// kernel: tpu_custom_call.1
$region0: #{tpu_custom_call.1}
  #allocation0 [shape = 'u32[]', space=smem, size = 0x4, offset = 0x4, fixed_abs, tag = 'smem constant byte address 0x4 - core index']
  #allocation1 [shape = 'u32[144,128]{1,0:T(1,128)}', space=vmem, size = 0x12000, scoped, tag = 'internal scratch']
  %s0 = inlined_call_operand.hbm [shape: f32[2,256], index: 0, kind: input, shape index: {}]
  %s1 = inlined_call_operand.hbm [shape: f32[1,256], index: 1, kind: input, shape index: {}]
  %s2 = inlined_call_operand.hbm [shape: f32[2,256], index: 2, kind: output, shape index: {}]
  %s3 = sld [smem:[#allocation0]]
  $region26: #{tpu_custom_call.1} parent=0
    _
  %s5 = ssub.s32 1, %s3
  %s6 = scalar_select 0, %s5, %s3
  $region1: #{tpu_custom_call.1} parent=0
    #allocation2 [shape = 'u8[2048]{0}', space=vmem, size = 0x800, scoped, tag = 'input window, operand 0, single buffered']
    #allocation3 [shape = 's32[1]{0}', space=sflag, size = 0x4, scoped, tag = 'scoped memory for tpu_custom_call.1']
    #allocation4 [shape = 's32[1]{0}', space=sflag, size = 0x4, scoped, tag = 'scoped memory for tpu_custom_call.1']
    #allocation5 [shape = 'u8[1024]{0}', space=vmem, size = 0x400, scoped, tag = 'input window, operand 1, single buffered']
    #allocation6 [shape = 's32[1]{0}', space=sflag, size = 0x4, scoped, tag = 'scoped memory for tpu_custom_call.1']
    #allocation7 [shape = 'u8[2048]{0}', space=vmem, size = 0x800, scoped, tag = 'output window, operand 0, single buffered']
    %7 = vsyncpa [#allocation3], 0
    %8 = vsyncpa [#allocation6], 0
    %9 = vsyncpa [#allocation4], 0
    // Predicated region
    $region2: #{tpu_custom_call.1} parent=1 // pred_check
      _
    $region3: #{tpu_custom_call.1} parent=1 // pred_check_branch
      %11 = sbr.rel (0) target = $region5
    $region4: #{tpu_custom_call.1} parent=1 // pred_region
      %s13 = ssub.s32 64, 64
      %14 = vsyncadd [#allocation3], %s13
      %s16 = sshll.u32 [#allocation2], 4
      %s17 = int_to_ptr.vmem [resolvable:$true] %s16
      %19 = dma.hbm_to_vmem [thread:$0]  %s0, 64, %s17, [#allocation3]
    $region5: #{tpu_custom_call.1} parent=1 // pred_fallthru
      _
    // Predicated region
    $region6: #{tpu_custom_call.1} parent=1 // pred_check
      _
    $region7: #{tpu_custom_call.1} parent=1 // pred_check_branch
      %21 = sbr.rel (0) target = $region9
    $region8: #{tpu_custom_call.1} parent=1 // pred_region
      %s23 = ssub.s32 32, 32
      %24 = vsyncadd [#allocation6], %s23
      %s26 = sshll.u32 [#allocation5], 4
      %s27 = int_to_ptr.vmem [resolvable:$true] %s26
      %29 = dma.hbm_to_vmem [thread:$0]  %s1, 32, %s27, [#allocation6]
    $region9: #{tpu_custom_call.1} parent=1 // pred_fallthru
      _
    // Predicated region
    $region10: #{tpu_custom_call.1} parent=1 // pred_check
      _
    $region11: #{tpu_custom_call.1} parent=1 // pred_check_branch
      %31 = sbr.rel (0) target = $region13
    $region12: #{tpu_custom_call.1} parent=1 // pred_region
      %32 = dma.done [#allocation3], 64
    $region13: #{tpu_custom_call.1} parent=1 // pred_fallthru
      _
    // Predicated region
    $region14: #{tpu_custom_call.1} parent=1 // pred_check
      _
    $region15: #{tpu_custom_call.1} parent=1 // pred_check_branch
      %34 = sbr.rel (0) target = $region17
    $region16: #{tpu_custom_call.1} parent=1 // pred_region
      %35 = dma.done [#allocation6], 32
    $region17: #{tpu_custom_call.1} parent=1 // pred_fallthru
      _
    %v36 = vld [vmem:[#allocation2] sm:$0xf]
    %v37 = vld [vmem:[#allocation5] sm:$0x3]
    %v39 = vlaneseq
    %v40 = vshrl.u32 %v39, 7
    %v41 = vsub.s32 0, %v40
    %v42 = vrot.slane %v37, %v41
    %v43 = vlaneseq
    %v44 = vshrl.u32 %v43, 7
    %v45 = vsub.s32 1, %v44
    %v46 = vrot.slane %v37, %v45
    %v47 = vcombine.low %v42, %v46
    %v49 = vunpack.c.l.s4 1983009808
    %v50 = vunpack.c.0.s8 %v49
    %v51 = vlaneseq
    %v52 = vshrl.u32 %v51, 7
    %v53 = vsub.s32 %v50, %v52
    %v54 = vrot.slane %v47, %v53
    %v56 = vadd.f32 %v36, %v54
    %57 = vst [vmem:[#allocation7] sm:$0xf] %v56
    // Predicated region
    $region18: #{tpu_custom_call.1} parent=1 // pred_check
      _
    $region19: #{tpu_custom_call.1} parent=1 // pred_check_branch
      %59 = sbr.rel (0) target = $region21
    $region20: #{tpu_custom_call.1} parent=1 // pred_region
      %s61 = ssub.s32 64, 64
      %62 = vsyncadd [#allocation4], %s61
      %s64 = sshll.u32 [#allocation7], 4
      %s65 = int_to_ptr.vmem [resolvable:$true] %s64
      %67 = dma.vmem_to_hbm [thread:$0]  %s65, 64, %s2, [#allocation4]
    $region21: #{tpu_custom_call.1} parent=1 // pred_fallthru
      _
    // Predicated region
    $region22: #{tpu_custom_call.1} parent=1 // pred_check
      _
    $region23: #{tpu_custom_call.1} parent=1 // pred_check_branch
      %69 = sbr.rel (0) target = $region25
    $region24: #{tpu_custom_call.1} parent=1 // pred_region
      %70 = dma.done [#allocation4], 64
    $region25: #{tpu_custom_call.1} parent=1 // pred_fallthru
      _
    %71 = vsyncpa [#allocation3], 1
    %72 = vsyncpa [#allocation6], 1
    %73 = vsyncpa [#allocation4], 1

</llo_original>
